<compile_context>
chip_gen: v7x
topology: tpu7x:2x2x1
jax: 0.10.0
libtpu: 0.0.40
codegen_flags: <defaults>
</compile_context>

<pallas_src>
import functools

import jax
import jax.numpy as jnp
from jax.experimental import pallas as pl
from jax.experimental.pallas import tpu as pltpu


def _pixel_shuffle_kernel(x_ref, o_ref, t_ref, *, r, th, w):
    # x_ref: (r*r, th, w)   -> input channels [oc*r*r : (oc+1)*r*r) for this H-tile
    # o_ref: (th*r, w*r)    -> lane-dense tile of the final NCHW output
    # t_ref: (w*r, th)      -> VMEM scratch (one output row-group, transposed)
    for i in range(r):                       # vertical sub-pixel position
        # Build O_i^T[w*r + j, h] = x[i*r + j, h, w] with sublane-strided
        # stores (lane stride stays 1).
        for j in range(r):                   # horizontal sub-pixel position
            t_ref[pl.ds(j, w, stride=r), :] = x_ref[i * r + j, :, :].T
        # O_i[h, w*r + j]: one minor-dim transpose back to lane-dense layout,
        # stored to output rows i, i+r, i+2r, ... (sublane stride r).
        o_ref[pl.ds(i, th, stride=r), :] = t_ref[...].T


def _choose_tile_h(H, W, r, itemsize, budget_bytes=8 * 1024 * 1024):
    """Largest valid H-tile whose double-buffered in+out blocks fit the budget."""

    def block_bytes(th):
        # input block (r*r*th*W) + output block (th*r*W*r) elements, each
        # double-buffered by the Pallas pipeline.
        return 2 * 2 * (r * r * th * W * itemsize)

    # Valid tile heights: the full H, or divisors of H that are multiples of 8
    # (keeps block shapes compatible with the (8, 128)/full-dim rule).
    candidates = [d for d in range(1, H + 1)
                  if H % d == 0 and (d == H or d % 8 == 0)]
    fitting = [d for d in candidates if block_bytes(d) <= budget_bytes]
    return max(fitting) if fitting else min(candidates)


def pixel_shuffle_2d(x, upscale_factor):
    """Pallas TPU implementation of PyTorch PixelShuffle2d.forward (NCHW)."""
    r = int(upscale_factor)
    B, C, H, W = x.shape
    assert C % (r * r) == 0, "in_channels must be divisible by upscale_factor**2"
    oc = C // (r * r)

    th = _choose_tile_h(H, W, r, jnp.dtype(x.dtype).itemsize)
    grid = (B, oc, H // th)

    kernel = functools.partial(_pixel_shuffle_kernel, r=r, th=th, w=W)

    return pl.pallas_call(
        kernel,
        out_shape=jax.ShapeDtypeStruct((B, oc, H * r, W * r), x.dtype),
        grid_spec=pltpu.PrefetchScalarGridSpec(
            num_scalar_prefetch=0,
            grid=grid,  # (batch, out_channel, H-tile)
            in_specs=[
                # All r*r source channels of output channel c, TH source rows.
                pl.BlockSpec((None, r * r, th, W),
                             lambda b, c, t: (b, c, t, 0)),
            ],
            out_specs=pl.BlockSpec(
                # Lane-dense (TH*r, W*r) tile of the final output.
                (None, None, th * r, W * r),
                lambda b, c, t: (b, c, t, 0),
            ),
            scratch_shapes=[pltpu.VMEM((W * r, th), x.dtype)],
        ),
        compiler_params=pltpu.CompilerParams(
            dimension_semantics=("parallel", "parallel", "parallel"),
        ),
    )(x)


def _reference_pixel_shuffle(x, r):
    # Pure-JAX transcription of the PyTorch forward, used only for verification.
    B, C, H, W = x.shape
    oc = C // (r * r)
    out = x.reshape(B, oc, r, r, H, W)
    out = jnp.transpose(out, (0, 1, 4, 2, 5, 3))
    return out.reshape(B, oc, H * r, W * r)


if __name__ == "__main__":
    key = jax.random.PRNGKey(0)
    upscale_factor = 2

    # Case 1: batch=2, in_channels=8 (=> out_channels=2), spatial 16x16.
    x = jax.random.normal(key, (2, 8, 16, 16), dtype=jnp.float32)
    out = jax.block_until_ready(pixel_shuffle_2d(x, upscale_factor))
    expected = _reference_pixel_shuffle(x, upscale_factor)
    assert out.shape == expected.shape == (2, 2, 32, 32), out.shape
    assert jnp.allclose(out, expected), "Pallas pixel shuffle mismatch (case 1)"

    # Case 2: batch=1, in_channels=16 (=> out_channels=4), spatial 8x16.
    key2 = jax.random.PRNGKey(0)
    x2 = jax.random.normal(key2, (1, 16, 8, 16), dtype=jnp.float32)
    out2 = jax.block_until_ready(pixel_shuffle_2d(x2, upscale_factor))
    expected2 = _reference_pixel_shuffle(x2, upscale_factor)
    assert out2.shape == expected2.shape == (1, 4, 16, 32), out2.shape
    assert jnp.allclose(out2, expected2), "Pallas pixel shuffle mismatch (case 2)"

    print("KERNEL_OK")
</pallas_src>

<mosaic_0001>
module attributes {stable_mosaic.version = 11 : i64} {
  func.func @_pixel_shuffle_kernel(%arg0: i32, %arg1: i32, %arg2: i32, %arg3: memref<1x4x16x16xf32, #tpu.memory_space<vmem>>, %arg4: memref<1x1x32x32xf32, #tpu.memory_space<vmem>>, %arg5: memref<32x16xf32, #tpu.memory_space<vmem>>) attributes {dimension_semantics = [#tpu.dimension_semantics<parallel>, #tpu.dimension_semantics<parallel>, #tpu.dimension_semantics<parallel>], iteration_bounds = array<i64: 2, 2, 1>, scalar_prefetch = 0 : i64, scratch_operands = 1 : i64, tpu.core_type = #tpu.core_type<tc>, window_params = [{transform_indices = @transform_0, window_bounds = array<i64: 1, 4, 16, 16>}, {transform_indices = @transform_1, window_bounds = array<i64: 1, 1, 32, 32>}]} {
    %c0 = arith.constant 0 : index
    %c0_0 = arith.constant 0 : index
    %c0_1 = arith.constant 0 : index
    %c0_2 = arith.constant 0 : index
    %0 = vector.load %arg3[%c0, %c0_0, %c0_1, %c0_2] : memref<1x4x16x16xf32, #tpu.memory_space<vmem>>, vector<1x1x16x16xf32>
    %1 = vector.shape_cast %0 : vector<1x1x16x16xf32> to vector<16x16xf32>
    %2 = tpu.transpose %1, [1, 0] : vector<16x16xf32> -> vector<16x16xf32>
    %c0_3 = arith.constant 0 : index
    %c0_4 = arith.constant 0 : index
    %3 = tpu.strided_load %arg5[%c0_3, %c0_4] {strides = array<i32: 2, 1>} : memref<32x16xf32, #tpu.memory_space<vmem>>, vector<16x16xf32>
    tpu.strided_store %arg5[%c0_3, %c0_4], %2 {strides = array<i32: 2, 1>} : memref<32x16xf32, #tpu.memory_space<vmem>>, vector<16x16xf32>
    %c0_5 = arith.constant 0 : index
    %c1 = arith.constant 1 : index
    %c0_6 = arith.constant 0 : index
    %c0_7 = arith.constant 0 : index
    %4 = vector.load %arg3[%c0_5, %c1, %c0_6, %c0_7] : memref<1x4x16x16xf32, #tpu.memory_space<vmem>>, vector<1x1x16x16xf32>
    %5 = vector.shape_cast %4 : vector<1x1x16x16xf32> to vector<16x16xf32>
    %6 = tpu.transpose %5, [1, 0] : vector<16x16xf32> -> vector<16x16xf32>
    %c1_8 = arith.constant 1 : index
    %c0_9 = arith.constant 0 : index
    %7 = tpu.strided_load %arg5[%c1_8, %c0_9] {strides = array<i32: 2, 1>} : memref<32x16xf32, #tpu.memory_space<vmem>>, vector<16x16xf32>
    tpu.strided_store %arg5[%c1_8, %c0_9], %6 {strides = array<i32: 2, 1>} : memref<32x16xf32, #tpu.memory_space<vmem>>, vector<16x16xf32>
    %c0_10 = arith.constant 0 : index
    %c0_11 = arith.constant 0 : index
    %8 = vector.load %arg5[%c0_10, %c0_11] : memref<32x16xf32, #tpu.memory_space<vmem>>, vector<32x16xf32>
    %9 = tpu.transpose %8, [1, 0] : vector<32x16xf32> -> vector<16x32xf32>
    %c0_12 = arith.constant 0 : index
    %c0_13 = arith.constant 0 : index
    %c0_14 = arith.constant 0 : index
    %c0_15 = arith.constant 0 : index
    %10 = tpu.strided_load %arg4[%c0_12, %c0_13, %c0_14, %c0_15] {strides = array<i32: 1, 1, 2, 1>} : memref<1x1x32x32xf32, #tpu.memory_space<vmem>>, vector<1x1x16x32xf32>
    %11 = vector.shape_cast %10 : vector<1x1x16x32xf32> to vector<16x32xf32>
    %12 = vector.shape_cast %9 : vector<16x32xf32> to vector<1x1x16x32xf32>
    tpu.strided_store %arg4[%c0_12, %c0_13, %c0_14, %c0_15], %12 {strides = array<i32: 1, 1, 2, 1>} : memref<1x1x32x32xf32, #tpu.memory_space<vmem>>, vector<1x1x16x32xf32>
    %c0_16 = arith.constant 0 : index
    %c2 = arith.constant 2 : index
    %c0_17 = arith.constant 0 : index
    %c0_18 = arith.constant 0 : index
    %13 = vector.load %arg3[%c0_16, %c2, %c0_17, %c0_18] : memref<1x4x16x16xf32, #tpu.memory_space<vmem>>, vector<1x1x16x16xf32>
    %14 = vector.shape_cast %13 : vector<1x1x16x16xf32> to vector<16x16xf32>
    %15 = tpu.transpose %14, [1, 0] : vector<16x16xf32> -> vector<16x16xf32>
    %c0_19 = arith.constant 0 : index
    %c0_20 = arith.constant 0 : index
    %16 = tpu.strided_load %arg5[%c0_19, %c0_20] {strides = array<i32: 2, 1>} : memref<32x16xf32, #tpu.memory_space<vmem>>, vector<16x16xf32>
    tpu.strided_store %arg5[%c0_19, %c0_20], %15 {strides = array<i32: 2, 1>} : memref<32x16xf32, #tpu.memory_space<vmem>>, vector<16x16xf32>
    %c0_21 = arith.constant 0 : index
    %c3 = arith.constant 3 : index
    %c0_22 = arith.constant 0 : index
    %c0_23 = arith.constant 0 : index
    %17 = vector.load %arg3[%c0_21, %c3, %c0_22, %c0_23] : memref<1x4x16x16xf32, #tpu.memory_space<vmem>>, vector<1x1x16x16xf32>
    %18 = vector.shape_cast %17 : vector<1x1x16x16xf32> to vector<16x16xf32>
    %19 = tpu.transpose %18, [1, 0] : vector<16x16xf32> -> vector<16x16xf32>
    %c1_24 = arith.constant 1 : index
    %c0_25 = arith.constant 0 : index
    %20 = tpu.strided_load %arg5[%c1_24, %c0_25] {strides = array<i32: 2, 1>} : memref<32x16xf32, #tpu.memory_space<vmem>>, vector<16x16xf32>
    tpu.strided_store %arg5[%c1_24, %c0_25], %19 {strides = array<i32: 2, 1>} : memref<32x16xf32, #tpu.memory_space<vmem>>, vector<16x16xf32>
    %c0_26 = arith.constant 0 : index
    %c0_27 = arith.constant 0 : index
    %21 = vector.load %arg5[%c0_26, %c0_27] : memref<32x16xf32, #tpu.memory_space<vmem>>, vector<32x16xf32>
    %22 = tpu.transpose %21, [1, 0] : vector<32x16xf32> -> vector<16x32xf32>
    %c0_28 = arith.constant 0 : index
    %c0_29 = arith.constant 0 : index
    %c1_30 = arith.constant 1 : index
    %c0_31 = arith.constant 0 : index
    %23 = tpu.strided_load %arg4[%c0_28, %c0_29, %c1_30, %c0_31] {strides = array<i32: 1, 1, 2, 1>} : memref<1x1x32x32xf32, #tpu.memory_space<vmem>>, vector<1x1x16x32xf32>
    %24 = vector.shape_cast %23 : vector<1x1x16x32xf32> to vector<16x32xf32>
    %25 = vector.shape_cast %22 : vector<16x32xf32> to vector<1x1x16x32xf32>
    tpu.strided_store %arg4[%c0_28, %c0_29, %c1_30, %c0_31], %25 {strides = array<i32: 1, 1, 2, 1>} : memref<1x1x32x32xf32, #tpu.memory_space<vmem>>, vector<1x1x16x32xf32>
    return
  }
  func.func @transform_0(%arg0: i32, %arg1: i32, %arg2: i32) -> (i32, i32, i32, i32) {
    %c0_i32 = arith.constant 0 : i32
    %c0_i32_0 = arith.constant 0 : i32
    return %arg0, %arg1, %arg2, %c0_i32 : i32, i32, i32, i32
  }
  func.func @transform_1(%arg0: i32, %arg1: i32, %arg2: i32) -> (i32, i32, i32, i32) {
    %c0_i32 = arith.constant 0 : i32
    %c0_i32_0 = arith.constant 0 : i32
    return %arg0, %arg1, %arg2, %c0_i32 : i32, i32, i32, i32
  }
}

</mosaic_0001>

<llo_original>
// kernel: tpu_custom_call.1
$region0: #{tpu_custom_call.1}
  #allocation0 [shape = 'u32[]', space=smem, size = 0x4, offset = 0x4, fixed_abs, tag = 'smem constant byte address 0x4 - core index']
  #allocation1 [shape = 'u32[144,128]{1,0:T(1,128)}', space=vmem, size = 0x12000, scoped, tag = 'internal scratch']
  #allocation2 [shape = 'f32[32,16]{1,0:T(8,128)}', space=vmem, size = 0x4000, scoped, tag = 'scratch operand']
  %s0 = inlined_call_operand.hbm [shape: f32[2,8,16,16], index: 0, kind: input, shape index: {}]
  %s1 = inlined_call_operand.hbm [shape: f32[2,2,32,32], index: 1, kind: output, shape index: {}]
  %s2 = sld [smem:[#allocation0]]
  $region41: #{tpu_custom_call.1} parent=0
    _
  %s4 = ssub.s32 1, %s2
  %s5 = scalar_select 0, %s4, %s2
  $region1: #{tpu_custom_call.1} parent=0
    #allocation3 [shape = 'u8[65536]{0}', space=vmem, size = 0x10000, scoped, tag = 'input window, operand 0']
    #allocation4 [shape = 's32[2]{0}', space=sflag, size = 0x8, scoped, tag = 'scoped memory for tpu_custom_call.1']
    #allocation5 [shape = 's32[2]{0}', space=sflag, size = 0x8, scoped, tag = 'scoped memory for tpu_custom_call.1']
    #allocation6 [shape = 'u8[32768]{0}', space=vmem, size = 0x8000, scoped, tag = 'output window, operand 0']
    %6 = vsyncpa [#allocation4], 0
    %s7 = scalar_lea.sflag [#allocation4], 1
    %8 = vsyncpa %s7, 0
    %9 = vsyncpa [#allocation5], 0
    %s10 = scalar_lea.sflag [#allocation5], 1
    %11 = vsyncpa %s10, 0
    loop: start=0, step=1, limit=6
    $region2: #{tpu_custom_call.1} parent=1 // loop_pre_header
      _
    $region3: #{tpu_custom_call.1} parent=1 // loop_header
      %s13 = sphi 0, %s17
      %p14 = scmp.ge.s32.totalorder %s13, 6
      %s20 = sphi 0, %s39
      %s21 = sphi 0, %s35
      %s22 = sphi 0, %s31
      %s23 = sphi 0, %s20
      %s24 = sphi 0, %s21
      %s25 = sphi 0, %s22
      %s26 = sphi 0, %s23
      %s27 = sphi 0, %s24
      %s28 = sphi 0, %s25
      %s46 = sphi 0, %s48
      %s49 = sphi 0, %s46
      %s50 = sphi 0, %s49
      %s66 = sphi 0, %s50
      %s76 = sphi 0, %s78
      %s79 = sphi 0, %s76
      %s80 = sphi 0, %s79
      %s96 = sphi 0, %s80
    $region4: #{tpu_custom_call.1} parent=1 // loop_header_branch
      %16 = sbr.rel (%p14) target = $region8
    $region5: #{tpu_custom_call.1} parent=1 // loop_body
      %s18 = ssub.s32 %s13, 1
      %s19 = ssub.s32 %s13, 2
      %s29 = sadd.s32 1, %s22
      %p30 = scmp.ge.s32.totalorder %s29, 1
      %s31 = scalar_select %p30, 0, %s29
      %s32 = sadd.s32 1, %s21
      %s33 = scalar_select %p30, %s32, %s21
      %p34 = scmp.ge.s32.totalorder %s33, 2
      %s35 = scalar_select %p34, 0, %s33
      %s36 = sadd.s32 1, %s20
      %s37 = scalar_select %p34, %s36, %s20
      %p38 = scmp.ge.s32.totalorder %s37, 2
      %s39 = scalar_select %p38, 0, %s37
      %s40 = ssub.s32 %s20, %s39
      %s41 = ssub.s32 %s21, %s35
      %s42 = sor.u32 %s40, %s41
      %s43 = ssub.s32 %s22, %s31
      %s44 = sor.u32 %s42, %s43
      %p45 = scmp.eq.s32.totalorder %s44, 0
      %s47 = sadd.s32 %s46, 1
      %s48 = scalar_select %p45, %s46, %s47
      %p51 = pneg %p45
      %p52 = scmp.eq.s32.totalorder %s13, 3
      %p53 = por %p51, %p52
      %p54 = scmp.ne.s32.totalorder %s46, %s49
      %p55 = scmp.eq.s32.totalorder %s13, 0
      %p56 = por %p54, %p55
      %p57 = scmp.ne.s32.totalorder %s46, %s49
      %p58 = scmp.eq.s32.totalorder %s18, 3
      %p59 = por %p57, %p58
      %p60 = scmp.ne.s32.totalorder %s49, %s50
      %p61 = scmp.eq.s32.totalorder %s18, 0
      %p62 = por %p60, %p61
      %p63 = scmp.ne.s32.totalorder %s49, %s50
      %p64 = scmp.eq.s32.totalorder %s19, 3
      %p65 = por %p63, %p64
      %p67 = scmp.ne.s32.totalorder %s50, %s66
      %p68 = scmp.eq.s32.totalorder %s19, 0
      %p69 = por %p67, %p68
      %s70 = ssub.s32 %s20, %s39
      %s71 = ssub.s32 %s21, %s35
      %s72 = sor.u32 %s70, %s71
      %s73 = ssub.s32 %s22, %s31
      %s74 = sor.u32 %s72, %s73
      %p75 = scmp.eq.s32.totalorder %s74, 0
      %s77 = sadd.s32 %s76, 1
      %s78 = scalar_select %p75, %s76, %s77
      %p81 = pneg %p75
      %p82 = scmp.eq.s32.totalorder %s13, 3
      %p83 = por %p81, %p82
      %p84 = scmp.ne.s32.totalorder %s76, %s79
      %p85 = scmp.eq.s32.totalorder %s13, 0
      %p86 = por %p84, %p85
      %p87 = scmp.ne.s32.totalorder %s76, %s79
      %p88 = scmp.eq.s32.totalorder %s18, 3
      %p89 = por %p87, %p88
      %p90 = scmp.ne.s32.totalorder %s79, %s80
      %p91 = scmp.eq.s32.totalorder %s18, 0
      %p92 = por %p90, %p91
      %p93 = scmp.ne.s32.totalorder %s79, %s80
      %p94 = scmp.eq.s32.totalorder %s19, 3
      %p95 = por %p93, %p94
      %p97 = scmp.ne.s32.totalorder %s80, %s96
      %p98 = scmp.eq.s32.totalorder %s19, 0
      %p99 = por %p97, %p98
      %p100 = scmp.le.s32.totalorder 1, %s13
      %p101 = scmp.lt.s32.totalorder %s13, 5
      %p102 = pnand %p100, %p101
      %p103 = pneg %p102
      // Predicated region
      $region9: #{tpu_custom_call.1} parent=5 // pred_check
        _
      $region10: #{tpu_custom_call.1} parent=5 // pred_check_branch
        %105 = sbr.rel (%p102) target = $region12
      $region11: #{tpu_custom_call.1} parent=5 // pred_region
        %s106 = ssub.s32 %s13, 1
      $region12: #{tpu_custom_call.1} parent=5 // pred_fallthru
        _
      %p107 = scmp.lt.s32.totalorder %s13, 4
      // Predicated region
      $region13: #{tpu_custom_call.1} parent=5 // pred_check
        %p108 = pneg %p107
      $region14: #{tpu_custom_call.1} parent=5 // pred_check_branch
        %110 = sbr.rel (%p108) target = $region16
      $region15: #{tpu_custom_call.1} parent=5 // pred_region
        // Predicated region
        $region17: #{tpu_custom_call.1} parent=15 // pred_check
          %p111 = pneg %p56
        $region18: #{tpu_custom_call.1} parent=15 // pred_check_branch
          %113 = sbr.rel (%p111) target = $region20
        $region19: #{tpu_custom_call.1} parent=15 // pred_region
          %s114 = sand.u32 %s46, 1
          %s115 = scalar_lea.sflag [#allocation4], %s114
          %s116 = sand.u32 %s46, 1
          %s117 = smul.addr %s116, 64
          %s118 = scalar_lea.vmem [#allocation3], %s117
          %s119 = smul.u32 4, %s21
          %s120 = smul.u32 2, %s22
          %s122 = ssub.s32 1024, 1024
          %123 = vsyncadd %s115, %s122
          %s124 = smul.addr %s119, 2
          %s125 = sadd.s32 %s120, %s124
          %s126 = smul.addr %s20, 16
          %s127 = sadd.s32 %s125, %s126
          %s128 = smul.addr %s127, 128
          %s129 = scalar_lea.hbm %s0, %s128
          %s130 = sshll.u32 %s118, 4
          %s131 = int_to_ptr.vmem [resolvable:$true] %s130
          %136 = dma.hbm_to_vmem [thread:$0]  %s129, 1024, %s131, %s115, 128, 128, 8
        $region20: #{tpu_custom_call.1} parent=15 // pred_fallthru
          _
      $region16: #{tpu_custom_call.1} parent=5 // pred_fallthru
        _
      %p137 = scmp.le.s32.totalorder 1, %s13
      %p138 = scmp.lt.s32.totalorder %s13, 5
      %p139 = pnand %p137, %p138
      %p140 = pneg %p139
      // Predicated region
      $region21: #{tpu_custom_call.1} parent=5 // pred_check
        _
      $region22: #{tpu_custom_call.1} parent=5 // pred_check_branch
        %142 = sbr.rel (%p139) target = $region24
      $region23: #{tpu_custom_call.1} parent=5 // pred_region
        %s143 = ssub.s32 %s13, 1
        %s144 = sand.u32 %s49, 1
        %s145 = scalar_lea.sflag [#allocation4], %s144
        %s146 = sand.u32 %s49, 1
        %s147 = smul.addr %s146, 64
        %s148 = scalar_lea.vmem [#allocation3], %s147
        // Predicated region
        $region25: #{tpu_custom_call.1} parent=23 // pred_check
          %p149 = pneg %p62
        $region26: #{tpu_custom_call.1} parent=23 // pred_check_branch
          %151 = sbr.rel (%p149) target = $region28
        $region27: #{tpu_custom_call.1} parent=23 // pred_region
          %152 = dma.done %s145, 1024
        $region28: #{tpu_custom_call.1} parent=23 // pred_fallthru
          _
        %s153 = sand.u32 %s49, 1
        %s154 = scalar_lea.sflag [#allocation4], %s153
        %s155 = sand.u32 %s49, 1
        %s156 = smul.addr %s155, 64
        %s157 = scalar_lea.vmem [#allocation3], %s156
        %p158 = pneg %p62
        %p159 = pneg %p59
        %p160 = pneg %p92
        %p161 = pneg %p89
        %s162 = sand.u32 %s79, 1
        %s163 = scalar_lea.sflag [#allocation5], %s162
        %s164 = sand.u32 %s79, 1
        %s165 = smul.addr %s164, 32
        %s166 = scalar_lea.vmem [#allocation6], %s165
        %s167 = smul.u32 4, %s24
        %s168 = smul.u32 2, %s25
        %s169 = smul.u32 4, %s25
        %v170 = vld [vmem:[%s148] sm:$0xff]
        %v171 = vld [vmem:[%s148 + $0x8] sm:$0xff]
        %172 = vxpose.xlu0.b32.start [1/16] %v170, 128
        %173 = vxpose.xlu0.b32.cont [2/16] %v171, 128
        %174 = vxpose.xlu0.b32.cont [3/16] 0.0, 128
        %175 = vxpose.xlu0.b32.cont [4/16] 0.0, 128
        %176 = vxpose.xlu0.b32.cont [5/16] 0.0, 128
        %177 = vxpose.xlu0.b32.cont [6/16] 0.0, 128
        %178 = vxpose.xlu0.b32.cont [7/16] 0.0, 128
        %179 = vxpose.xlu0.b32.cont [8/16] 0.0, 128
        %180 = vxpose.xlu0.b32.cont [9/16] 0.0, 128
        %181 = vxpose.xlu0.b32.cont [10/16] 0.0, 128
        %182 = vxpose.xlu0.b32.cont [11/16] 0.0, 128
        %183 = vxpose.xlu0.b32.cont [12/16] 0.0, 128
        %184 = vxpose.xlu0.b32.cont [13/16] 0.0, 128
        %185 = vxpose.xlu0.b32.cont [14/16] 0.0, 128
        %186 = vxpose.xlu0.b32.cont [15/16] 0.0, 128
        %187 = vxpose.xlu0.b32.end [16/16] 0.0, 128
        %v188 = vpop.trf.xlu0
        %v189 = vpop.trf.xlu0
        %v190 = vpop.trf.xlu0
        %v191 = vpop.trf.xlu0
        %v192 = vpop.trf.xlu0
        %v193 = vpop.trf.xlu0
        %v194 = vpop.trf.xlu0
        %v195 = vpop.trf.xlu0
        %v196 = vpop.trf.xlu0
        %v197 = vpop.trf.xlu0
        %v198 = vpop.trf.xlu0
        %v199 = vpop.trf.xlu0
        %v200 = vpop.trf.xlu0
        %v201 = vpop.trf.xlu0
        %v202 = vpop.trf.xlu0
        %v203 = vpop.trf.xlu0
        %204 = vst [vmem:[#allocation2] ss:$2 sm:$0xff] %v188
        %s205 = scalar_lea.vmem [#allocation2], 16
        %206 = vst [vmem:[%s205] ss:$2 sm:$0xff] %v189
        %s207 = scalar_lea.vmem %s148, 16 [#allocation3]
        %v208 = vld [vmem:[%s207] sm:$0xff]
        %v209 = vld [vmem:[%s207 + $0x8] sm:$0xff]
        %210 = vxpose.xlu0.b32.start [1/16] %v208, 128
        %211 = vxpose.xlu0.b32.cont [2/16] %v209, 128
        %212 = vxpose.xlu0.b32.cont [3/16] 0.0, 128
        %213 = vxpose.xlu0.b32.cont [4/16] 0.0, 128
        %214 = vxpose.xlu0.b32.cont [5/16] 0.0, 128
        %215 = vxpose.xlu0.b32.cont [6/16] 0.0, 128
        %216 = vxpose.xlu0.b32.cont [7/16] 0.0, 128
        %217 = vxpose.xlu0.b32.cont [8/16] 0.0, 128
        %218 = vxpose.xlu0.b32.cont [9/16] 0.0, 128
        %219 = vxpose.xlu0.b32.cont [10/16] 0.0, 128
        %220 = vxpose.xlu0.b32.cont [11/16] 0.0, 128
        %221 = vxpose.xlu0.b32.cont [12/16] 0.0, 128
        %222 = vxpose.xlu0.b32.cont [13/16] 0.0, 128
        %223 = vxpose.xlu0.b32.cont [14/16] 0.0, 128
        %224 = vxpose.xlu0.b32.cont [15/16] 0.0, 128
        %225 = vxpose.xlu0.b32.end [16/16] 0.0, 128
        %v226 = vpop.trf.xlu0
        %v227 = vpop.trf.xlu0
        %v228 = vpop.trf.xlu0
        %v229 = vpop.trf.xlu0
        %v230 = vpop.trf.xlu0
        %v231 = vpop.trf.xlu0
        %v232 = vpop.trf.xlu0
        %v233 = vpop.trf.xlu0
        %v234 = vpop.trf.xlu0
        %v235 = vpop.trf.xlu0
        %v236 = vpop.trf.xlu0
        %v237 = vpop.trf.xlu0
        %v238 = vpop.trf.xlu0
        %v239 = vpop.trf.xlu0
        %v240 = vpop.trf.xlu0
        %v241 = vpop.trf.xlu0
        %s242 = scalar_lea.vmem [#allocation2], 1
        %243 = vst [vmem:[%s242] ss:$2 sm:$0xff] %v226
        %s244 = scalar_lea.vmem [#allocation2], 17
        %245 = vst [vmem:[%s244] ss:$2 sm:$0xff] %v227
        %v246 = vld [vmem:[#allocation2] sm:$0xff]
        %v247 = vld [vmem:[#allocation2 + $0x8] sm:$0xff]
        %v248 = vld [vmem:[#allocation2 + $0x10] sm:$0xff]
        %v249 = vld [vmem:[#allocation2 + $0x18] sm:$0xff]
        %250 = vxpose.xlu0.b32.start [1/16] %v246, 128
        %251 = vxpose.xlu0.b32.cont [2/16] %v247, 128
        %252 = vxpose.xlu0.b32.cont [3/16] %v248, 128
        %253 = vxpose.xlu0.b32.cont [4/16] %v249, 128
        %254 = vxpose.xlu0.b32.cont [5/16] 0.0, 128
        %255 = vxpose.xlu0.b32.cont [6/16] 0.0, 128
        %256 = vxpose.xlu0.b32.cont [7/16] 0.0, 128
        %257 = vxpose.xlu0.b32.cont [8/16] 0.0, 128
        %258 = vxpose.xlu0.b32.cont [9/16] 0.0, 128
        %259 = vxpose.xlu0.b32.cont [10/16] 0.0, 128
        %260 = vxpose.xlu0.b32.cont [11/16] 0.0, 128
        %261 = vxpose.xlu0.b32.cont [12/16] 0.0, 128
        %262 = vxpose.xlu0.b32.cont [13/16] 0.0, 128
        %263 = vxpose.xlu0.b32.cont [14/16] 0.0, 128
        %264 = vxpose.xlu0.b32.cont [15/16] 0.0, 128
        %265 = vxpose.xlu0.b32.end [16/16] 0.0, 128
        %v266 = vpop.trf.xlu0
        %v267 = vpop.trf.xlu0
        %v268 = vpop.trf.xlu0
        %v269 = vpop.trf.xlu0
        %v270 = vpop.trf.xlu0
        %v271 = vpop.trf.xlu0
        %v272 = vpop.trf.xlu0
        %v273 = vpop.trf.xlu0
        %v274 = vpop.trf.xlu0
        %v275 = vpop.trf.xlu0
        %v276 = vpop.trf.xlu0
        %v277 = vpop.trf.xlu0
        %v278 = vpop.trf.xlu0
        %v279 = vpop.trf.xlu0
        %v280 = vpop.trf.xlu0
        %v281 = vpop.trf.xlu0
        %282 = vst [vmem:[%s166] ss:$2 sm:$0xff] %v266
        %s283 = scalar_lea.vmem %s166, 16 [#allocation6]
        %284 = vst [vmem:[%s283] ss:$2 sm:$0xff] %v267
        %s285 = scalar_lea.vmem %s148, 32 [#allocation3]
        %v286 = vld [vmem:[%s285] sm:$0xff]
        %v287 = vld [vmem:[%s285 + $0x8] sm:$0xff]
        %288 = vxpose.xlu0.b32.start [1/16] %v286, 128
        %289 = vxpose.xlu0.b32.cont [2/16] %v287, 128
        %290 = vxpose.xlu0.b32.cont [3/16] 0.0, 128
        %291 = vxpose.xlu0.b32.cont [4/16] 0.0, 128
        %292 = vxpose.xlu0.b32.cont [5/16] 0.0, 128
        %293 = vxpose.xlu0.b32.cont [6/16] 0.0, 128
        %294 = vxpose.xlu0.b32.cont [7/16] 0.0, 128
        %295 = vxpose.xlu0.b32.cont [8/16] 0.0, 128
        %296 = vxpose.xlu0.b32.cont [9/16] 0.0, 128
        %297 = vxpose.xlu0.b32.cont [10/16] 0.0, 128
        %298 = vxpose.xlu0.b32.cont [11/16] 0.0, 128
        %299 = vxpose.xlu0.b32.cont [12/16] 0.0, 128
        %300 = vxpose.xlu0.b32.cont [13/16] 0.0, 128
        %301 = vxpose.xlu0.b32.cont [14/16] 0.0, 128
        %302 = vxpose.xlu0.b32.cont [15/16] 0.0, 128
        %303 = vxpose.xlu0.b32.end [16/16] 0.0, 128
        %v304 = vpop.trf.xlu0
        %v305 = vpop.trf.xlu0
        %v306 = vpop.trf.xlu0
        %v307 = vpop.trf.xlu0
        %v308 = vpop.trf.xlu0
        %v309 = vpop.trf.xlu0
        %v310 = vpop.trf.xlu0
        %v311 = vpop.trf.xlu0
        %v312 = vpop.trf.xlu0
        %v313 = vpop.trf.xlu0
        %v314 = vpop.trf.xlu0
        %v315 = vpop.trf.xlu0
        %v316 = vpop.trf.xlu0
        %v317 = vpop.trf.xlu0
        %v318 = vpop.trf.xlu0
        %v319 = vpop.trf.xlu0
        %320 = vst [vmem:[#allocation2] ss:$2 sm:$0xff] %v304
        %321 = vst [vmem:[%s205] ss:$2 sm:$0xff] %v305
        %s322 = scalar_lea.vmem %s148, 48 [#allocation3]
        %v323 = vld [vmem:[%s322] sm:$0xff]
        %v324 = vld [vmem:[%s322 + $0x8] sm:$0xff]
        %325 = vxpose.xlu0.b32.start [1/16] %v323, 128
        %326 = vxpose.xlu0.b32.cont [2/16] %v324, 128
        %327 = vxpose.xlu0.b32.cont [3/16] 0.0, 128
        %328 = vxpose.xlu0.b32.cont [4/16] 0.0, 128
        %329 = vxpose.xlu0.b32.cont [5/16] 0.0, 128
        %330 = vxpose.xlu0.b32.cont [6/16] 0.0, 128
        %331 = vxpose.xlu0.b32.cont [7/16] 0.0, 128
        %332 = vxpose.xlu0.b32.cont [8/16] 0.0, 128
        %333 = vxpose.xlu0.b32.cont [9/16] 0.0, 128
        %334 = vxpose.xlu0.b32.cont [10/16] 0.0, 128
        %335 = vxpose.xlu0.b32.cont [11/16] 0.0, 128
        %336 = vxpose.xlu0.b32.cont [12/16] 0.0, 128
        %337 = vxpose.xlu0.b32.cont [13/16] 0.0, 128
        %338 = vxpose.xlu0.b32.cont [14/16] 0.0, 128
        %339 = vxpose.xlu0.b32.cont [15/16] 0.0, 128
        %340 = vxpose.xlu0.b32.end [16/16] 0.0, 128
        %v341 = vpop.trf.xlu0
        %v342 = vpop.trf.xlu0
        %v343 = vpop.trf.xlu0
        %v344 = vpop.trf.xlu0
        %v345 = vpop.trf.xlu0
        %v346 = vpop.trf.xlu0
        %v347 = vpop.trf.xlu0
        %v348 = vpop.trf.xlu0
        %v349 = vpop.trf.xlu0
        %v350 = vpop.trf.xlu0
        %v351 = vpop.trf.xlu0
        %v352 = vpop.trf.xlu0
        %v353 = vpop.trf.xlu0
        %v354 = vpop.trf.xlu0
        %v355 = vpop.trf.xlu0
        %v356 = vpop.trf.xlu0
        %357 = vst [vmem:[%s242] ss:$2 sm:$0xff] %v341
        %358 = vst [vmem:[%s244] ss:$2 sm:$0xff] %v342
        %v359 = vld [vmem:[#allocation2] sm:$0xff]
        %v360 = vld [vmem:[#allocation2 + $0x8] sm:$0xff]
        %v361 = vld [vmem:[#allocation2 + $0x10] sm:$0xff]
        %v362 = vld [vmem:[#allocation2 + $0x18] sm:$0xff]
        %363 = vxpose.xlu0.b32.start [1/16] %v359, 128
        %364 = vxpose.xlu0.b32.cont [2/16] %v360, 128
        %365 = vxpose.xlu0.b32.cont [3/16] %v361, 128
        %366 = vxpose.xlu0.b32.cont [4/16] %v362, 128
        %367 = vxpose.xlu0.b32.cont [5/16] 0.0, 128
        %368 = vxpose.xlu0.b32.cont [6/16] 0.0, 128
        %369 = vxpose.xlu0.b32.cont [7/16] 0.0, 128
        %370 = vxpose.xlu0.b32.cont [8/16] 0.0, 128
        %371 = vxpose.xlu0.b32.cont [9/16] 0.0, 128
        %372 = vxpose.xlu0.b32.cont [10/16] 0.0, 128
        %373 = vxpose.xlu0.b32.cont [11/16] 0.0, 128
        %374 = vxpose.xlu0.b32.cont [12/16] 0.0, 128
        %375 = vxpose.xlu0.b32.cont [13/16] 0.0, 128
        %376 = vxpose.xlu0.b32.cont [14/16] 0.0, 128
        %377 = vxpose.xlu0.b32.cont [15/16] 0.0, 128
        %378 = vxpose.xlu0.b32.end [16/16] 0.0, 128
        %v379 = vpop.trf.xlu0
        %v380 = vpop.trf.xlu0
        %v381 = vpop.trf.xlu0
        %v382 = vpop.trf.xlu0
        %v383 = vpop.trf.xlu0
        %v384 = vpop.trf.xlu0
        %v385 = vpop.trf.xlu0
        %v386 = vpop.trf.xlu0
        %v387 = vpop.trf.xlu0
        %v388 = vpop.trf.xlu0
        %v389 = vpop.trf.xlu0
        %v390 = vpop.trf.xlu0
        %v391 = vpop.trf.xlu0
        %v392 = vpop.trf.xlu0
        %v393 = vpop.trf.xlu0
        %v394 = vpop.trf.xlu0
        %s395 = scalar_lea.vmem %s166, 1 [#allocation6]
        %396 = vst [vmem:[%s395] ss:$2 sm:$0xff] %v379
        %s397 = scalar_lea.vmem %s166, 17 [#allocation6]
        %398 = vst [vmem:[%s397] ss:$2 sm:$0xff] %v380
        %s399 = sand.u32 %s79, 1
        %s400 = scalar_lea.sflag [#allocation5], %s399
        %s401 = sand.u32 %s79, 1
        %s402 = smul.addr %s401, 32
        %s403 = scalar_lea.vmem [#allocation6], %s402
        // Predicated region
        $region29: #{tpu_custom_call.1} parent=23 // pred_check
          %p404 = pneg %p89
        $region30: #{tpu_custom_call.1} parent=23 // pred_check_branch
          %406 = sbr.rel (%p404) target = $region32
        $region31: #{tpu_custom_call.1} parent=23 // pred_region
          %s407 = smul.u32 4, %s25
          %s409 = ssub.s32 512, 512
          %410 = vsyncadd %s400, %s409
          %s411 = smul.addr %s24, 4
          %s412 = sadd.s32 %s407, %s411
          %s413 = smul.addr %s23, 8
          %s414 = sadd.s32 %s412, %s413
          %s415 = smul.addr %s414, 128
          %s416 = scalar_lea.hbm %s1, %s415
          %s417 = sshll.u32 %s403, 4
          %s418 = int_to_ptr.vmem [resolvable:$true] %s417
          %423 = dma.vmem_to_hbm [thread:$0]  %s418, 512, %s416, %s400, 128, 128, 8
        $region32: #{tpu_custom_call.1} parent=23 // pred_fallthru
          _
      $region24: #{tpu_custom_call.1} parent=5 // pred_fallthru
        _
      %p424 = scmp.le.s32.totalorder 2, %s13
      // Predicated region
      $region33: #{tpu_custom_call.1} parent=5 // pred_check
        %p425 = pneg %p424
      $region34: #{tpu_custom_call.1} parent=5 // pred_check_branch
        %427 = sbr.rel (%p425) target = $region36
      $region35: #{tpu_custom_call.1} parent=5 // pred_region
        %s428 = ssub.s32 %s13, 2
        // Predicated region
        $region37: #{tpu_custom_call.1} parent=35 // pred_check
          %p429 = pneg %p95
        $region38: #{tpu_custom_call.1} parent=35 // pred_check_branch
          %431 = sbr.rel (%p429) target = $region40
        $region39: #{tpu_custom_call.1} parent=35 // pred_region
          %s432 = sand.u32 %s80, 1
          %s433 = scalar_lea.sflag [#allocation5], %s432
          %s434 = sand.u32 %s80, 1
          %s435 = smul.addr %s434, 32
          %s436 = scalar_lea.vmem [#allocation6], %s435
          %437 = dma.done %s433, 512
        $region40: #{tpu_custom_call.1} parent=35 // pred_fallthru
          _
      $region36: #{tpu_custom_call.1} parent=5 // pred_fallthru
        _
    $region6: #{tpu_custom_call.1} parent=1 // loop_footer
      %s17 = sadd.s32 1, %s13
    $region7: #{tpu_custom_call.1} parent=1 // loop_footer_branch
      %12 = sbr.rel target = $region3
    $region8: #{tpu_custom_call.1} parent=1 // loop_exit
      _
    %438 = vsyncpa [#allocation4], 1
    %s439 = scalar_lea.sflag [#allocation4], 1
    %440 = vsyncpa %s439, 1
    %441 = vsyncpa [#allocation5], 1
    %s442 = scalar_lea.sflag [#allocation5], 1
    %443 = vsyncpa %s442, 1

</llo_original>
